<compile_context>
chip_gen: v7x
topology: tpu7x:2x2x1
jax: 0.10.0
libtpu: 0.0.40
codegen_flags: <defaults>
</compile_context>

<pallas_src>
import jax
import jax.numpy as jnp
from jax import lax
from jax.experimental import pallas as pl
from jax.experimental.pallas import tpu as pltpu


def _round_up(x: int, m: int) -> int:
    return (x + m - 1) // m * m


# --------------------------------------------------------------------------------------
# Path 1: small table resident in VMEM -- on-chip row gather, no per-row HBM DMAs.
# --------------------------------------------------------------------------------------
def _vmem_gather_kernel(ids_ref, tbl_ref, out_ref):
    """ids_ref: SMEM (n_pad,) i32 | tbl_ref: VMEM (vocab, n_emb) | out_ref: VMEM (tq, n_emb)."""
    tq = out_ref.shape[0]
    base = pl.program_id(0) * tq
    # tq is kept small (<= 64) on this path, so a static unroll is cheap; each row is one
    # dynamic-start read from the resident table plus one static-offset store.
    for t in range(tq):
        row = ids_ref[base + t]
        out_ref[pl.ds(t, 1), :] = tbl_ref[pl.ds(row, 1), :]


# --------------------------------------------------------------------------------------
# Path 2: table stays in HBM -- wave-pipelined row DMAs straight into the output block.
# --------------------------------------------------------------------------------------
def _hbm_gather_kernel(ids_ref, tbl_ref, out_ref, sems):
    """Gather one output tile of `tq` embedding rows from the HBM-resident table.

    ids_ref : SMEM (n_pad,) i32     scalar-prefetched token ids (global indices)
    tbl_ref : HBM  (vocab, n_emb)   raw ref (pl.ANY); only referenced rows are DMA'd
    out_ref : VMEM (tq, n_emb)      pipelined output tile; DMA destination (no bounce buf)
    sems    : DMA  (2, ts)          one semaphore per in-flight row DMA, double-banked
    """
    tq = out_ref.shape[0]
    ts = sems.shape[1]            # rows per DMA wave (static)
    n_waves = tq // ts            # static

    base = pl.program_id(0) * tq

    def start_wave(wave):
        # All scalar id reads happen here, *before* any semaphore wait (keeps the SMEM
        # address path ahead of the waits); all ts row DMAs are left in flight.
        slot = wave % 2
        for t in range(ts):
            dst_row = wave * ts + t
            # Padded slots (beyond the real token count) simply fetch row 0; their output
            # rows are sliced off in the wrapper, so the extra DMA work is harmless.
            pltpu.make_async_copy(
                tbl_ref.at[pl.ds(ids_ref[base + dst_row], 1)],   # (1, n_emb) HBM row
                out_ref.at[pl.ds(dst_row, 1)],                   # straight into out tile
                sems.at[slot, t],
            ).start()

    def wait_wave(wave):
        slot = wave % 2
        for t in range(ts):
            dst_row = wave * ts + t
            pltpu.make_async_copy(
                tbl_ref.at[pl.ds(0, 1)],          # shape-only; wait keys off dst + sem
                out_ref.at[pl.ds(dst_row, 1)],
                sems.at[slot, t],
            ).wait()

    start_wave(0)

    def body(wave, carry):
        # Prefetch the next wave before waiting on the current one: HBM read latency is
        # hidden behind the wave already in flight (double-buffered semaphore banks, rows
        # land directly in the pipelined output block).
        @pl.when(wave + 1 < n_waves)
        def _():
            start_wave(wave + 1)

        wait_wave(wave)
        return carry

    lax.fori_loop(0, n_waves, body, 0)


# --------------------------------------------------------------------------------------
# Wrapper: dispatch + tiling decisions.
# --------------------------------------------------------------------------------------
def word_embeddings(ids, table, *, tokens_per_step=256, rows_per_wave=32,
                    out_vmem_budget_bytes=16 * 1024 * 1024,
                    vmem_table_bytes_max=4 * 1024 * 1024,
                    force_hbm_gather=False):
    """Pallas equivalent of nn.Embedding(vocabs, n_emb)(ids) -> ids.shape + (n_emb,)."""
    vocab, n_emb = table.shape
    lead_shape = ids.shape
    flat = ids.reshape(-1).astype(jnp.int32)
    n = int(flat.shape[0])

    row_bytes = n_emb * jnp.dtype(table.dtype).itemsize
    table_bytes = vocab * row_bytes

    # NOTE: the whole flattened id vector is scalar-prefetched into SMEM; fine up to
    # roughly 100K tokens.
    # TODO(synk): chunk / stage the id prefetch per-tile for very long sequences.

    use_vmem_path = (not force_hbm_gather) and table_bytes <= vmem_table_bytes_max

    if use_vmem_path:
        # Small-table fast path: whole table in VMEM (fetched once), on-chip row gather.
        tq = min(64, _round_up(n, 8))              # leading block dim always a multiple of 8
        n_pad = _round_up(n, tq)
        if n_pad != n:
            flat = jnp.pad(flat, (0, n_pad - n))
        out = pl.pallas_call(
            _vmem_gather_kernel,
            out_shape=jax.ShapeDtypeStruct((n_pad, n_emb), table.dtype),
            grid_spec=pltpu.PrefetchScalarGridSpec(
                num_scalar_prefetch=1,
                grid=(n_pad // tq,),
                in_specs=[pl.BlockSpec((vocab, n_emb), lambda i, ids_s: (0, 0))],
                out_specs=pl.BlockSpec((tq, n_emb), lambda i, ids_s: (i, 0)),
            ),
            compiler_params=pltpu.CompilerParams(
                dimension_semantics=("parallel",),
                vmem_limit_bytes=32 * 1024 * 1024,
            ),
        )(flat, table)
    else:
        # HBM gather path.  The pipeline keeps 2 output buffers of (tq, n_emb) live and the
        # gather DMAs land directly in them, so the VMEM budget only has to cover those.
        ts = rows_per_wave                                        # multiple of 8
        max_tq = max(ts, (out_vmem_budget_bytes // (2 * row_bytes)) // ts * ts)
        tq = max(ts, min(tokens_per_step, max_tq, _round_up(n, ts)))
        tq = (tq // ts) * ts                                      # multiple of ts (and of 8)
        n_pad = _round_up(n, tq)
        if n_pad != n:
            flat = jnp.pad(flat, (0, n_pad - n))
        vmem_limit = int(max(32 * 1024 * 1024, min(96 * 1024 * 1024, 4 * tq * row_bytes)))
        out = pl.pallas_call(
            _hbm_gather_kernel,
            out_shape=jax.ShapeDtypeStruct((n_pad, n_emb), table.dtype),
            grid_spec=pltpu.PrefetchScalarGridSpec(
                num_scalar_prefetch=1,
                grid=(n_pad // tq,),
                in_specs=[pl.BlockSpec(memory_space=pl.ANY)],     # table stays in HBM
                out_specs=pl.BlockSpec((tq, n_emb), lambda i, ids_s: (i, 0)),
                scratch_shapes=[pltpu.SemaphoreType.DMA((2, ts))],
            ),
            compiler_params=pltpu.CompilerParams(
                dimension_semantics=("parallel",),
                vmem_limit_bytes=vmem_limit,
            ),
        )(flat, table)

    return out[:n].reshape(*lead_shape, n_emb)


if __name__ == "__main__":
    # Small shapes consistent with the module: token ids (batch, seq), table (vocabs, n_emb).
    batch, seq = 4, 16
    vocabs, n_emb = 512, 128

    key = jax.random.PRNGKey(0)
    k_ids, k_tbl = jax.random.split(key)
    ids = jax.random.randint(k_ids, (batch, seq), 0, vocabs, dtype=jnp.int32)
    # nn.Embedding default init ~ N(0, 1)
    table = jax.random.normal(k_tbl, (vocabs, n_emb), jnp.float32)

    ref = table[ids]  # pure-JAX reference (gather is exact)

    # 1) Small-table fast path (table fits in VMEM; the demo table takes this route).
    out_fast = jax.block_until_ready(word_embeddings(ids, table))
    assert out_fast.shape == (batch, seq, n_emb), out_fast.shape
    assert out_fast.dtype == table.dtype
    assert jnp.array_equal(out_fast, ref), \
        f"fast path max abs err {jnp.max(jnp.abs(out_fast - ref))}"

    # 2) HBM-resident gather path (forced; this is the path real vocab tables take).
    out_hbm = jax.block_until_ready(word_embeddings(ids, table, force_hbm_gather=True))
    assert out_hbm.shape == (batch, seq, n_emb), out_hbm.shape
    assert out_hbm.dtype == table.dtype
    assert jnp.array_equal(out_hbm, ref), \
        f"hbm path max abs err {jnp.max(jnp.abs(out_hbm - ref))}"

    print("KERNEL_OK")
</pallas_src>

<mosaic_0001>
module attributes {stable_mosaic.version = 11 : i64} {
  func.func @_vmem_gather_kernel(%arg0: i32, %arg1: memref<64xi32, #tpu.memory_space<smem>>, %arg2: memref<512x128xf32, #tpu.memory_space<vmem>>, %arg3: memref<64x128xf32, #tpu.memory_space<vmem>>) attributes {dimension_semantics = [#tpu.dimension_semantics<parallel>], iteration_bounds = array<i64: 1>, scalar_prefetch = 1 : i64, scratch_operands = 0 : i64, tpu.core_type = #tpu.core_type<tc>, window_params = [{pipeline_mode = #tpu.pipeline_mode<synchronous>, transform_indices = @transform_0, window_bounds = array<i64: 512, 128>}, {transform_indices = @transform_1, window_bounds = array<i64: 64, 128>}]} {
    %c64_i32 = arith.constant 64 : i32
    %0 = arith.muli %arg0, %c64_i32 : i32
    %c0_i32 = arith.constant 0 : i32
    %1 = arith.addi %0, %c0_i32 : i32
    %2 = arith.index_cast %1 : i32 to index
    %3 = memref.load %arg1[%2] : memref<64xi32, #tpu.memory_space<smem>>
    %4 = arith.index_cast %3 : i32 to index
    %c0 = arith.constant 0 : index
    %5 = vector.load %arg2[%4, %c0] : memref<512x128xf32, #tpu.memory_space<vmem>>, vector<1x128xf32>
    %c0_0 = arith.constant 0 : index
    %c0_1 = arith.constant 0 : index
    %6 = vector.load %arg3[%c0_0, %c0_1] : memref<64x128xf32, #tpu.memory_space<vmem>>, vector<1x128xf32>
    tpu.vector_store %arg3[%c0_0, %c0_1], %5 {strides = array<i32>} : memref<64x128xf32, #tpu.memory_space<vmem>>, vector<1x128xf32>,
    %c1_i32 = arith.constant 1 : i32
    %7 = arith.addi %0, %c1_i32 : i32
    %8 = arith.index_cast %7 : i32 to index
    %9 = memref.load %arg1[%8] : memref<64xi32, #tpu.memory_space<smem>>
    %10 = arith.index_cast %9 : i32 to index
    %c0_2 = arith.constant 0 : index
    %11 = vector.load %arg2[%10, %c0_2] : memref<512x128xf32, #tpu.memory_space<vmem>>, vector<1x128xf32>
    %c1 = arith.constant 1 : index
    %c0_3 = arith.constant 0 : index
    %12 = vector.load %arg3[%c1, %c0_3] : memref<64x128xf32, #tpu.memory_space<vmem>>, vector<1x128xf32>
    tpu.vector_store %arg3[%c1, %c0_3], %11 {strides = array<i32>} : memref<64x128xf32, #tpu.memory_space<vmem>>, vector<1x128xf32>,
    %c2_i32 = arith.constant 2 : i32
    %13 = arith.addi %0, %c2_i32 : i32
    %14 = arith.index_cast %13 : i32 to index
    %15 = memref.load %arg1[%14] : memref<64xi32, #tpu.memory_space<smem>>
    %16 = arith.index_cast %15 : i32 to index
    %c0_4 = arith.constant 0 : index
    %17 = vector.load %arg2[%16, %c0_4] : memref<512x128xf32, #tpu.memory_space<vmem>>, vector<1x128xf32>
    %c2 = arith.constant 2 : index
    %c0_5 = arith.constant 0 : index
    %18 = vector.load %arg3[%c2, %c0_5] : memref<64x128xf32, #tpu.memory_space<vmem>>, vector<1x128xf32>
    tpu.vector_store %arg3[%c2, %c0_5], %17 {strides = array<i32>} : memref<64x128xf32, #tpu.memory_space<vmem>>, vector<1x128xf32>,
    %c3_i32 = arith.constant 3 : i32
    %19 = arith.addi %0, %c3_i32 : i32
    %20 = arith.index_cast %19 : i32 to index
    %21 = memref.load %arg1[%20] : memref<64xi32, #tpu.memory_space<smem>>
    %22 = arith.index_cast %21 : i32 to index
    %c0_6 = arith.constant 0 : index
    %23 = vector.load %arg2[%22, %c0_6] : memref<512x128xf32, #tpu.memory_space<vmem>>, vector<1x128xf32>
    %c3 = arith.constant 3 : index
    %c0_7 = arith.constant 0 : index
    %24 = vector.load %arg3[%c3, %c0_7] : memref<64x128xf32, #tpu.memory_space<vmem>>, vector<1x128xf32>
    tpu.vector_store %arg3[%c3, %c0_7], %23 {strides = array<i32>} : memref<64x128xf32, #tpu.memory_space<vmem>>, vector<1x128xf32>,
    %c4_i32 = arith.constant 4 : i32
    %25 = arith.addi %0, %c4_i32 : i32
    %26 = arith.index_cast %25 : i32 to index
    %27 = memref.load %arg1[%26] : memref<64xi32, #tpu.memory_space<smem>>
    %28 = arith.index_cast %27 : i32 to index
    %c0_8 = arith.constant 0 : index
    %29 = vector.load %arg2[%28, %c0_8] : memref<512x128xf32, #tpu.memory_space<vmem>>, vector<1x128xf32>
    %c4 = arith.constant 4 : index
    %c0_9 = arith.constant 0 : index
    %30 = vector.load %arg3[%c4, %c0_9] : memref<64x128xf32, #tpu.memory_space<vmem>>, vector<1x128xf32>
    tpu.vector_store %arg3[%c4, %c0_9], %29 {strides = array<i32>} : memref<64x128xf32, #tpu.memory_space<vmem>>, vector<1x128xf32>,
    %c5_i32 = arith.constant 5 : i32
    %31 = arith.addi %0, %c5_i32 : i32
    %32 = arith.index_cast %31 : i32 to index
    %33 = memref.load %arg1[%32] : memref<64xi32, #tpu.memory_space<smem>>
    %34 = arith.index_cast %33 : i32 to index
    %c0_10 = arith.constant 0 : index
    %35 = vector.load %arg2[%34, %c0_10] : memref<512x128xf32, #tpu.memory_space<vmem>>, vector<1x128xf32>
    %c5 = arith.constant 5 : index
    %c0_11 = arith.constant 0 : index
    %36 = vector.load %arg3[%c5, %c0_11] : memref<64x128xf32, #tpu.memory_space<vmem>>, vector<1x128xf32>
    tpu.vector_store %arg3[%c5, %c0_11], %35 {strides = array<i32>} : memref<64x128xf32, #tpu.memory_space<vmem>>, vector<1x128xf32>,
    %c6_i32 = arith.constant 6 : i32
    %37 = arith.addi %0, %c6_i32 : i32
    %38 = arith.index_cast %37 : i32 to index
    %39 = memref.load %arg1[%38] : memref<64xi32, #tpu.memory_space<smem>>
    %40 = arith.index_cast %39 : i32 to index
    %c0_12 = arith.constant 0 : index
    %41 = vector.load %arg2[%40, %c0_12] : memref<512x128xf32, #tpu.memory_space<vmem>>, vector<1x128xf32>
    %c6 = arith.constant 6 : index
    %c0_13 = arith.constant 0 : index
    %42 = vector.load %arg3[%c6, %c0_13] : memref<64x128xf32, #tpu.memory_space<vmem>>, vector<1x128xf32>
    tpu.vector_store %arg3[%c6, %c0_13], %41 {strides = array<i32>} : memref<64x128xf32, #tpu.memory_space<vmem>>, vector<1x128xf32>,
    %c7_i32 = arith.constant 7 : i32
    %43 = arith.addi %0, %c7_i32 : i32
    %44 = arith.index_cast %43 : i32 to index
    %45 = memref.load %arg1[%44] : memref<64xi32, #tpu.memory_space<smem>>
    %46 = arith.index_cast %45 : i32 to index
    %c0_14 = arith.constant 0 : index
    %47 = vector.load %arg2[%46, %c0_14] : memref<512x128xf32, #tpu.memory_space<vmem>>, vector<1x128xf32>
    %c7 = arith.constant 7 : index
    %c0_15 = arith.constant 0 : index
    %48 = vector.load %arg3[%c7, %c0_15] : memref<64x128xf32, #tpu.memory_space<vmem>>, vector<1x128xf32>
    tpu.vector_store %arg3[%c7, %c0_15], %47 {strides = array<i32>} : memref<64x128xf32, #tpu.memory_space<vmem>>, vector<1x128xf32>,
    %c8_i32 = arith.constant 8 : i32
    %49 = arith.addi %0, %c8_i32 : i32
    %50 = arith.index_cast %49 : i32 to index
    %51 = memref.load %arg1[%50] : memref<64xi32, #tpu.memory_space<smem>>
    %52 = arith.index_cast %51 : i32 to index
    %c0_16 = arith.constant 0 : index
    %53 = vector.load %arg2[%52, %c0_16] : memref<512x128xf32, #tpu.memory_space<vmem>>, vector<1x128xf32>
    %c8 = arith.constant 8 : index
    %c0_17 = arith.constant 0 : index
    %54 = vector.load %arg3[%c8, %c0_17] : memref<64x128xf32, #tpu.memory_space<vmem>>, vector<1x128xf32>
    tpu.vector_store %arg3[%c8, %c0_17], %53 {strides = array<i32>} : memref<64x128xf32, #tpu.memory_space<vmem>>, vector<1x128xf32>,
    %c9_i32 = arith.constant 9 : i32
    %55 = arith.addi %0, %c9_i32 : i32
    %56 = arith.index_cast %55 : i32 to index
    %57 = memref.load %arg1[%56] : memref<64xi32, #tpu.memory_space<smem>>
    %58 = arith.index_cast %57 : i32 to index
    %c0_18 = arith.constant 0 : index
    %59 = vector.load %arg2[%58, %c0_18] : memref<512x128xf32, #tpu.memory_space<vmem>>, vector<1x128xf32>
    %c9 = arith.constant 9 : index
    %c0_19 = arith.constant 0 : index
    %60 = vector.load %arg3[%c9, %c0_19] : memref<64x128xf32, #tpu.memory_space<vmem>>, vector<1x128xf32>
    tpu.vector_store %arg3[%c9, %c0_19], %59 {strides = array<i32>} : memref<64x128xf32, #tpu.memory_space<vmem>>, vector<1x128xf32>,
    %c10_i32 = arith.constant 10 : i32
    %61 = arith.addi %0, %c10_i32 : i32
    %62 = arith.index_cast %61 : i32 to index
    %63 = memref.load %arg1[%62] : memref<64xi32, #tpu.memory_space<smem>>
    %64 = arith.index_cast %63 : i32 to index
    %c0_20 = arith.constant 0 : index
    %65 = vector.load %arg2[%64, %c0_20] : memref<512x128xf32, #tpu.memory_space<vmem>>, vector<1x128xf32>
    %c10 = arith.constant 10 : index
    %c0_21 = arith.constant 0 : index
    %66 = vector.load %arg3[%c10, %c0_21] : memref<64x128xf32, #tpu.memory_space<vmem>>, vector<1x128xf32>
    tpu.vector_store %arg3[%c10, %c0_21], %65 {strides = array<i32>} : memref<64x128xf32, #tpu.memory_space<vmem>>, vector<1x128xf32>,
    %c11_i32 = arith.constant 11 : i32
    %67 = arith.addi %0, %c11_i32 : i32
    %68 = arith.index_cast %67 : i32 to index
    %69 = memref.load %arg1[%68] : memref<64xi32, #tpu.memory_space<smem>>
    %70 = arith.index_cast %69 : i32 to index
    %c0_22 = arith.constant 0 : index
    %71 = vector.load %arg2[%70, %c0_22] : memref<512x128xf32, #tpu.memory_space<vmem>>, vector<1x128xf32>
    %c11 = arith.constant 11 : index
    %c0_23 = arith.constant 0 : index
    %72 = vector.load %arg3[%c11, %c0_23] : memref<64x128xf32, #tpu.memory_space<vmem>>, vector<1x128xf32>
    tpu.vector_store %arg3[%c11, %c0_23], %71 {strides = array<i32>} : memref<64x128xf32, #tpu.memory_space<vmem>>, vector<1x128xf32>,
    %c12_i32 = arith.constant 12 : i32
    %73 = arith.addi %0, %c12_i32 : i32
    %74 = arith.index_cast %73 : i32 to index
    %75 = memref.load %arg1[%74] : memref<64xi32, #tpu.memory_space<smem>>
    %76 = arith.index_cast %75 : i32 to index
    %c0_24 = arith.constant 0 : index
    %77 = vector.load %arg2[%76, %c0_24] : memref<512x128xf32, #tpu.memory_space<vmem>>, vector<1x128xf32>
    %c12 = arith.constant 12 : index
    %c0_25 = arith.constant 0 : index
    %78 = vector.load %arg3[%c12, %c0_25] : memref<64x128xf32, #tpu.memory_space<vmem>>, vector<1x128xf32>
    tpu.vector_store %arg3[%c12, %c0_25], %77 {strides = array<i32>} : memref<64x128xf32, #tpu.memory_space<vmem>>, vector<1x128xf32>,
    %c13_i32 = arith.constant 13 : i32
    %79 = arith.addi %0, %c13_i32 : i32
    %80 = arith.index_cast %79 : i32 to index
    %81 = memref.load %arg1[%80] : memref<64xi32, #tpu.memory_space<smem>>
    %82 = arith.index_cast %81 : i32 to index
    %c0_26 = arith.constant 0 : index
    %83 = vector.load %arg2[%82, %c0_26] : memref<512x128xf32, #tpu.memory_space<vmem>>, vector<1x128xf32>
    %c13 = arith.constant 13 : index
    %c0_27 = arith.constant 0 : index
    %84 = vector.load %arg3[%c13, %c0_27] : memref<64x128xf32, #tpu.memory_space<vmem>>, vector<1x128xf32>
    tpu.vector_store %arg3[%c13, %c0_27], %83 {strides = array<i32>} : memref<64x128xf32, #tpu.memory_space<vmem>>, vector<1x128xf32>,
    %c14_i32 = arith.constant 14 : i32
    %85 = arith.addi %0, %c14_i32 : i32
    %86 = arith.index_cast %85 : i32 to index
    %87 = memref.load %arg1[%86] : memref<64xi32, #tpu.memory_space<smem>>
    %88 = arith.index_cast %87 : i32 to index
    %c0_28 = arith.constant 0 : index
    %89 = vector.load %arg2[%88, %c0_28] : memref<512x128xf32, #tpu.memory_space<vmem>>, vector<1x128xf32>
    %c14 = arith.constant 14 : index
    %c0_29 = arith.constant 0 : index
    %90 = vector.load %arg3[%c14, %c0_29] : memref<64x128xf32, #tpu.memory_space<vmem>>, vector<1x128xf32>
    tpu.vector_store %arg3[%c14, %c0_29], %89 {strides = array<i32>} : memref<64x128xf32, #tpu.memory_space<vmem>>, vector<1x128xf32>,
    %c15_i32 = arith.constant 15 : i32
    %91 = arith.addi %0, %c15_i32 : i32
    %92 = arith.index_cast %91 : i32 to index
    %93 = memref.load %arg1[%92] : memref<64xi32, #tpu.memory_space<smem>>
    %94 = arith.index_cast %93 : i32 to index
    %c0_30 = arith.constant 0 : index
    %95 = vector.load %arg2[%94, %c0_30] : memref<512x128xf32, #tpu.memory_space<vmem>>, vector<1x128xf32>
    %c15 = arith.constant 15 : index
    %c0_31 = arith.constant 0 : index
    %96 = vector.load %arg3[%c15, %c0_31] : memref<64x128xf32, #tpu.memory_space<vmem>>, vector<1x128xf32>
    tpu.vector_store %arg3[%c15, %c0_31], %95 {strides = array<i32>} : memref<64x128xf32, #tpu.memory_space<vmem>>, vector<1x128xf32>,
    %c16_i32 = arith.constant 16 : i32
    %97 = arith.addi %0, %c16_i32 : i32
    %98 = arith.index_cast %97 : i32 to index
    %99 = memref.load %arg1[%98] : memref<64xi32, #tpu.memory_space<smem>>
    %100 = arith.index_cast %99 : i32 to index
    %c0_32 = arith.constant 0 : index
    %101 = vector.load %arg2[%100, %c0_32] : memref<512x128xf32, #tpu.memory_space<vmem>>, vector<1x128xf32>
    %c16 = arith.constant 16 : index
    %c0_33 = arith.constant 0 : index
    %102 = vector.load %arg3[%c16, %c0_33] : memref<64x128xf32, #tpu.memory_space<vmem>>, vector<1x128xf32>
    tpu.vector_store %arg3[%c16, %c0_33], %101 {strides = array<i32>} : memref<64x128xf32, #tpu.memory_space<vmem>>, vector<1x128xf32>,
    %c17_i32 = arith.constant 17 : i32
    %103 = arith.addi %0, %c17_i32 : i32
    %104 = arith.index_cast %103 : i32 to index
    %105 = memref.load %arg1[%104] : memref<64xi32, #tpu.memory_space<smem>>
    %106 = arith.index_cast %105 : i32 to index
    %c0_34 = arith.constant 0 : index
    %107 = vector.load %arg2[%106, %c0_34] : memref<512x128xf32, #tpu.memory_space<vmem>>, vector<1x128xf32>
    %c17 = arith.constant 17 : index
    %c0_35 = arith.constant 0 : index
    %108 = vector.load %arg3[%c17, %c0_35] : memref<64x128xf32, #tpu.memory_space<vmem>>, vector<1x128xf32>
    tpu.vector_store %arg3[%c17, %c0_35], %107 {strides = array<i32>} : memref<64x128xf32, #tpu.memory_space<vmem>>, vector<1x128xf32>,
    %c18_i32 = arith.constant 18 : i32
    %109 = arith.addi %0, %c18_i32 : i32
    %110 = arith.index_cast %109 : i32 to index
    %111 = memref.load %arg1[%110] : memref<64xi32, #tpu.memory_space<smem>>
    %112 = arith.index_cast %111 : i32 to index
    %c0_36 = arith.constant 0 : index
    %113 = vector.load %arg2[%112, %c0_36] : memref<512x128xf32, #tpu.memory_space<vmem>>, vector<1x128xf32>
    %c18 = arith.constant 18 : index
    %c0_37 = arith.constant 0 : index
    %114 = vector.load %arg3[%c18, %c0_37] : memref<64x128xf32, #tpu.memory_space<vmem>>, vector<1x128xf32>
    tpu.vector_store %arg3[%c18, %c0_37], %113 {strides = array<i32>} : memref<64x128xf32, #tpu.memory_space<vmem>>, vector<1x128xf32>,
    %c19_i32 = arith.constant 19 : i32
    %115 = arith.addi %0, %c19_i32 : i32
    %116 = arith.index_cast %115 : i32 to index
    %117 = memref.load %arg1[%116] : memref<64xi32, #tpu.memory_space<smem>>
    %118 = arith.index_cast %117 : i32 to index
    %c0_38 = arith.constant 0 : index
    %119 = vector.load %arg2[%118, %c0_38] : memref<512x128xf32, #tpu.memory_space<vmem>>, vector<1x128xf32>
    %c19 = arith.constant 19 : index
    %c0_39 = arith.constant 0 : index
    %120 = vector.load %arg3[%c19, %c0_39] : memref<64x128xf32, #tpu.memory_space<vmem>>, vector<1x128xf32>
    tpu.vector_store %arg3[%c19, %c0_39], %119 {strides = array<i32>} : memref<64x128xf32, #tpu.memory_space<vmem>>, vector<1x128xf32>,
    %c20_i32 = arith.constant 20 : i32
    %121 = arith.addi %0, %c20_i32 : i32
    %122 = arith.index_cast %121 : i32 to index
    %123 = memref.load %arg1[%122] : memref<64xi32, #tpu.memory_space<smem>>
    %124 = arith.index_cast %123 : i32 to index
    %c0_40 = arith.constant 0 : index
    %125 = vector.load %arg2[%124, %c0_40] : memref<512x128xf32, #tpu.memory_space<vmem>>, vector<1x128xf32>
    %c20 = arith.constant 20 : index
    %c0_41 = arith.constant 0 : index
    %126 = vector.load %arg3[%c20, %c0_41] : memref<64x128xf32, #tpu.memory_space<vmem>>, vector<1x128xf32>
    tpu.vector_store %arg3[%c20, %c0_41], %125 {strides = array<i32>} : memref<64x128xf32, #tpu.memory_space<vmem>>, vector<1x128xf32>,
    %c21_i32 = arith.constant 21 : i32
    %127 = arith.addi %0, %c21_i32 : i32
    %128 = arith.index_cast %127 : i32 to index
    %129 = memref.load %arg1[%128] : memref<64xi32, #tpu.memory_space<smem>>
    %130 = arith.index_cast %129 : i32 to index
    %c0_42 = arith.constant 0 : index
    %131 = vector.load %arg2[%130, %c0_42] : memref<512x128xf32, #tpu.memory_space<vmem>>, vector<1x128xf32>
    %c21 = arith.constant 21 : index
    %c0_43 = arith.constant 0 : index
    %132 = vector.load %arg3[%c21, %c0_43] : memref<64x128xf32, #tpu.memory_space<vmem>>, vector<1x128xf32>
    tpu.vector_store %arg3[%c21, %c0_43], %131 {strides = array<i32>} : memref<64x128xf32, #tpu.memory_space<vmem>>, vector<1x128xf32>,
    %c22_i32 = arith.constant 22 : i32
    %133 = arith.addi %0, %c22_i32 : i32
    %134 = arith.index_cast %133 : i32 to index
    %135 = memref.load %arg1[%134] : memref<64xi32, #tpu.memory_space<smem>>
    %136 = arith.index_cast %135 : i32 to index
    %c0_44 = arith.constant 0 : index
    %137 = vector.load %arg2[%136, %c0_44] : memref<512x128xf32, #tpu.memory_space<vmem>>, vector<1x128xf32>
    %c22 = arith.constant 22 : index
    %c0_45 = arith.constant 0 : index
    %138 = vector.load %arg3[%c22, %c0_45] : memref<64x128xf32, #tpu.memory_space<vmem>>, vector<1x128xf32>
    tpu.vector_store %arg3[%c22, %c0_45], %137 {strides = array<i32>} : memref<64x128xf32, #tpu.memory_space<vmem>>, vector<1x128xf32>,
    %c23_i32 = arith.constant 23 : i32
    %139 = arith.addi %0, %c23_i32 : i32
    %140 = arith.index_cast %139 : i32 to index
    %141 = memref.load %arg1[%140] : memref<64xi32, #tpu.memory_space<smem>>
    %142 = arith.index_cast %141 : i32 to index
    %c0_46 = arith.constant 0 : index
    %143 = vector.load %arg2[%142, %c0_46] : memref<512x128xf32, #tpu.memory_space<vmem>>, vector<1x128xf32>
    %c23 = arith.constant 23 : index
    %c0_47 = arith.constant 0 : index
    %144 = vector.load %arg3[%c23, %c0_47] : memref<64x128xf32, #tpu.memory_space<vmem>>, vector<1x128xf32>
    tpu.vector_store %arg3[%c23, %c0_47], %143 {strides = array<i32>} : memref<64x128xf32, #tpu.memory_space<vmem>>, vector<1x128xf32>,
    %c24_i32 = arith.constant 24 : i32
    %145 = arith.addi %0, %c24_i32 : i32
    %146 = arith.index_cast %145 : i32 to index
    %147 = memref.load %arg1[%146] : memref<64xi32, #tpu.memory_space<smem>>
    %148 = arith.index_cast %147 : i32 to index
    %c0_48 = arith.constant 0 : index
    %149 = vector.load %arg2[%148, %c0_48] : memref<512x128xf32, #tpu.memory_space<vmem>>, vector<1x128xf32>
    %c24 = arith.constant 24 : index
    %c0_49 = arith.constant 0 : index
    %150 = vector.load %arg3[%c24, %c0_49] : memref<64x128xf32, #tpu.memory_space<vmem>>, vector<1x128xf32>
    tpu.vector_store %arg3[%c24, %c0_49], %149 {strides = array<i32>} : memref<64x128xf32, #tpu.memory_space<vmem>>, vector<1x128xf32>,
    %c25_i32 = arith.constant 25 : i32
    %151 = arith.addi %0, %c25_i32 : i32
    %152 = arith.index_cast %151 : i32 to index
    %153 = memref.load %arg1[%152] : memref<64xi32, #tpu.memory_space<smem>>
    %154 = arith.index_cast %153 : i32 to index
    %c0_50 = arith.constant 0 : index
    %155 = vector.load %arg2[%154, %c0_50] : memref<512x128xf32, #tpu.memory_space<vmem>>, vector<1x128xf32>
    %c25 = arith.constant 25 : index
    %c0_51 = arith.constant 0 : index
    %156 = vector.load %arg3[%c25, %c0_51] : memref<64x128xf32, #tpu.memory_space<vmem>>, vector<1x128xf32>
    tpu.vector_store %arg3[%c25, %c0_51], %155 {strides = array<i32>} : memref<64x128xf32, #tpu.memory_space<vmem>>, vector<1x128xf32>,
    %c26_i32 = arith.constant 26 : i32
    %157 = arith.addi %0, %c26_i32 : i32
    %158 = arith.index_cast %157 : i32 to index
    %159 = memref.load %arg1[%158] : memref<64xi32, #tpu.memory_space<smem>>
    %160 = arith.index_cast %159 : i32 to index
    %c0_52 = arith.constant 0 : index
    %161 = vector.load %arg2[%160, %c0_52] : memref<512x128xf32, #tpu.memory_space<vmem>>, vector<1x128xf32>
    %c26 = arith.constant 26 : index
    %c0_53 = arith.constant 0 : index
    %162 = vector.load %arg3[%c26, %c0_53] : memref<64x128xf32, #tpu.memory_space<vmem>>, vector<1x128xf32>
    tpu.vector_store %arg3[%c26, %c0_53], %161 {strides = array<i32>} : memref<64x128xf32, #tpu.memory_space<vmem>>, vector<1x128xf32>,
    %c27_i32 = arith.constant 27 : i32
    %163 = arith.addi %0, %c27_i32 : i32
    %164 = arith.index_cast %163 : i32 to index
    %165 = memref.load %arg1[%164] : memref<64xi32, #tpu.memory_space<smem>>
    %166 = arith.index_cast %165 : i32 to index
    %c0_54 = arith.constant 0 : index
    %167 = vector.load %arg2[%166, %c0_54] : memref<512x128xf32, #tpu.memory_space<vmem>>, vector<1x128xf32>
    %c27 = arith.constant 27 : index
    %c0_55 = arith.constant 0 : index
    %168 = vector.load %arg3[%c27, %c0_55] : memref<64x128xf32, #tpu.memory_space<vmem>>, vector<1x128xf32>
    tpu.vector_store %arg3[%c27, %c0_55], %167 {strides = array<i32>} : memref<64x128xf32, #tpu.memory_space<vmem>>, vector<1x128xf32>,
    %c28_i32 = arith.constant 28 : i32
    %169 = arith.addi %0, %c28_i32 : i32
    %170 = arith.index_cast %169 : i32 to index
    %171 = memref.load %arg1[%170] : memref<64xi32, #tpu.memory_space<smem>>
    %172 = arith.index_cast %171 : i32 to index
    %c0_56 = arith.constant 0 : index
    %173 = vector.load %arg2[%172, %c0_56] : memref<512x128xf32, #tpu.memory_space<vmem>>, vector<1x128xf32>
    %c28 = arith.constant 28 : index
    %c0_57 = arith.constant 0 : index
    %174 = vector.load %arg3[%c28, %c0_57] : memref<64x128xf32, #tpu.memory_space<vmem>>, vector<1x128xf32>
    tpu.vector_store %arg3[%c28, %c0_57], %173 {strides = array<i32>} : memref<64x128xf32, #tpu.memory_space<vmem>>, vector<1x128xf32>,
    %c29_i32 = arith.constant 29 : i32
    %175 = arith.addi %0, %c29_i32 : i32
    %176 = arith.index_cast %175 : i32 to index
    %177 = memref.load %arg1[%176] : memref<64xi32, #tpu.memory_space<smem>>
    %178 = arith.index_cast %177 : i32 to index
    %c0_58 = arith.constant 0 : index
    %179 = vector.load %arg2[%178, %c0_58] : memref<512x128xf32, #tpu.memory_space<vmem>>, vector<1x128xf32>
    %c29 = arith.constant 29 : index
    %c0_59 = arith.constant 0 : index
    %180 = vector.load %arg3[%c29, %c0_59] : memref<64x128xf32, #tpu.memory_space<vmem>>, vector<1x128xf32>
    tpu.vector_store %arg3[%c29, %c0_59], %179 {strides = array<i32>} : memref<64x128xf32, #tpu.memory_space<vmem>>, vector<1x128xf32>,
    %c30_i32 = arith.constant 30 : i32
    %181 = arith.addi %0, %c30_i32 : i32
    %182 = arith.index_cast %181 : i32 to index
    %183 = memref.load %arg1[%182] : memref<64xi32, #tpu.memory_space<smem>>
    %184 = arith.index_cast %183 : i32 to index
    %c0_60 = arith.constant 0 : index
    %185 = vector.load %arg2[%184, %c0_60] : memref<512x128xf32, #tpu.memory_space<vmem>>, vector<1x128xf32>
    %c30 = arith.constant 30 : index
    %c0_61 = arith.constant 0 : index
    %186 = vector.load %arg3[%c30, %c0_61] : memref<64x128xf32, #tpu.memory_space<vmem>>, vector<1x128xf32>
    tpu.vector_store %arg3[%c30, %c0_61], %185 {strides = array<i32>} : memref<64x128xf32, #tpu.memory_space<vmem>>, vector<1x128xf32>,
    %c31_i32 = arith.constant 31 : i32
    %187 = arith.addi %0, %c31_i32 : i32
    %188 = arith.index_cast %187 : i32 to index
    %189 = memref.load %arg1[%188] : memref<64xi32, #tpu.memory_space<smem>>
    %190 = arith.index_cast %189 : i32 to index
    %c0_62 = arith.constant 0 : index
    %191 = vector.load %arg2[%190, %c0_62] : memref<512x128xf32, #tpu.memory_space<vmem>>, vector<1x128xf32>
    %c31 = arith.constant 31 : index
    %c0_63 = arith.constant 0 : index
    %192 = vector.load %arg3[%c31, %c0_63] : memref<64x128xf32, #tpu.memory_space<vmem>>, vector<1x128xf32>
    tpu.vector_store %arg3[%c31, %c0_63], %191 {strides = array<i32>} : memref<64x128xf32, #tpu.memory_space<vmem>>, vector<1x128xf32>,
    %c32_i32 = arith.constant 32 : i32
    %193 = arith.addi %0, %c32_i32 : i32
    %194 = arith.index_cast %193 : i32 to index
    %195 = memref.load %arg1[%194] : memref<64xi32, #tpu.memory_space<smem>>
    %196 = arith.index_cast %195 : i32 to index
    %c0_64 = arith.constant 0 : index
    %197 = vector.load %arg2[%196, %c0_64] : memref<512x128xf32, #tpu.memory_space<vmem>>, vector<1x128xf32>
    %c32 = arith.constant 32 : index
    %c0_65 = arith.constant 0 : index
    %198 = vector.load %arg3[%c32, %c0_65] : memref<64x128xf32, #tpu.memory_space<vmem>>, vector<1x128xf32>
    tpu.vector_store %arg3[%c32, %c0_65], %197 {strides = array<i32>} : memref<64x128xf32, #tpu.memory_space<vmem>>, vector<1x128xf32>,
    %c33_i32 = arith.constant 33 : i32
    %199 = arith.addi %0, %c33_i32 : i32
    %200 = arith.index_cast %199 : i32 to index
    %201 = memref.load %arg1[%200] : memref<64xi32, #tpu.memory_space<smem>>
    %202 = arith.index_cast %201 : i32 to index
    %c0_66 = arith.constant 0 : index
    %203 = vector.load %arg2[%202, %c0_66] : memref<512x128xf32, #tpu.memory_space<vmem>>, vector<1x128xf32>
    %c33 = arith.constant 33 : index
    %c0_67 = arith.constant 0 : index
    %204 = vector.load %arg3[%c33, %c0_67] : memref<64x128xf32, #tpu.memory_space<vmem>>, vector<1x128xf32>
    tpu.vector_store %arg3[%c33, %c0_67], %203 {strides = array<i32>} : memref<64x128xf32, #tpu.memory_space<vmem>>, vector<1x128xf32>,
    %c34_i32 = arith.constant 34 : i32
    %205 = arith.addi %0, %c34_i32 : i32
    %206 = arith.index_cast %205 : i32 to index
    %207 = memref.load %arg1[%206] : memref<64xi32, #tpu.memory_space<smem>>
    %208 = arith.index_cast %207 : i32 to index
    %c0_68 = arith.constant 0 : index
    %209 = vector.load %arg2[%208, %c0_68] : memref<512x128xf32, #tpu.memory_space<vmem>>, vector<1x128xf32>
    %c34 = arith.constant 34 : index
    %c0_69 = arith.constant 0 : index
    %210 = vector.load %arg3[%c34, %c0_69] : memref<64x128xf32, #tpu.memory_space<vmem>>, vector<1x128xf32>
    tpu.vector_store %arg3[%c34, %c0_69], %209 {strides = array<i32>} : memref<64x128xf32, #tpu.memory_space<vmem>>, vector<1x128xf32>,
    %c35_i32 = arith.constant 35 : i32
    %211 = arith.addi %0, %c35_i32 : i32
    %212 = arith.index_cast %211 : i32 to index
    %213 = memref.load %arg1[%212] : memref<64xi32, #tpu.memory_space<smem>>
    %214 = arith.index_cast %213 : i32 to index
    %c0_70 = arith.constant 0 : index
    %215 = vector.load %arg2[%214, %c0_70] : memref<512x128xf32, #tpu.memory_space<vmem>>, vector<1x128xf32>
    %c35 = arith.constant 35 : index
    %c0_71 = arith.constant 0 : index
    %216 = vector.load %arg3[%c35, %c0_71] : memref<64x128xf32, #tpu.memory_space<vmem>>, vector<1x128xf32>
    tpu.vector_store %arg3[%c35, %c0_71], %215 {strides = array<i32>} : memref<64x128xf32, #tpu.memory_space<vmem>>, vector<1x128xf32>,
    %c36_i32 = arith.constant 36 : i32
    %217 = arith.addi %0, %c36_i32 : i32
    %218 = arith.index_cast %217 : i32 to index
    %219 = memref.load %arg1[%218] : memref<64xi32, #tpu.memory_space<smem>>
    %220 = arith.index_cast %219 : i32 to index
    %c0_72 = arith.constant 0 : index
    %221 = vector.load %arg2[%220, %c0_72] : memref<512x128xf32, #tpu.memory_space<vmem>>, vector<1x128xf32>
    %c36 = arith.constant 36 : index
    %c0_73 = arith.constant 0 : index
    %222 = vector.load %arg3[%c36, %c0_73] : memref<64x128xf32, #tpu.memory_space<vmem>>, vector<1x128xf32>
    tpu.vector_store %arg3[%c36, %c0_73], %221 {strides = array<i32>} : memref<64x128xf32, #tpu.memory_space<vmem>>, vector<1x128xf32>,
    %c37_i32 = arith.constant 37 : i32
    %223 = arith.addi %0, %c37_i32 : i32
    %224 = arith.index_cast %223 : i32 to index
    %225 = memref.load %arg1[%224] : memref<64xi32, #tpu.memory_space<smem>>
    %226 = arith.index_cast %225 : i32 to index
    %c0_74 = arith.constant 0 : index
    %227 = vector.load %arg2[%226, %c0_74] : memref<512x128xf32, #tpu.memory_space<vmem>>, vector<1x128xf32>
    %c37 = arith.constant 37 : index
    %c0_75 = arith.constant 0 : index
    %228 = vector.load %arg3[%c37, %c0_75] : memref<64x128xf32, #tpu.memory_space<vmem>>, vector<1x128xf32>
    tpu.vector_store %arg3[%c37, %c0_75], %227 {strides = array<i32>} : memref<64x128xf32, #tpu.memory_space<vmem>>, vector<1x128xf32>,
    %c38_i32 = arith.constant 38 : i32
    %229 = arith.addi %0, %c38_i32 : i32
    %230 = arith.index_cast %229 : i32 to index
    %231 = memref.load %arg1[%230] : memref<64xi32, #tpu.memory_space<smem>>
    %232 = arith.index_cast %231 : i32 to index
    %c0_76 = arith.constant 0 : index
    %233 = vector.load %arg2[%232, %c0_76] : memref<512x128xf32, #tpu.memory_space<vmem>>, vector<1x128xf32>
    %c38 = arith.constant 38 : index
    %c0_77 = arith.constant 0 : index
    %234 = vector.load %arg3[%c38, %c0_77] : memref<64x128xf32, #tpu.memory_space<vmem>>, vector<1x128xf32>
    tpu.vector_store %arg3[%c38, %c0_77], %233 {strides = array<i32>} : memref<64x128xf32, #tpu.memory_space<vmem>>, vector<1x128xf32>,
    %c39_i32 = arith.constant 39 : i32
    %235 = arith.addi %0, %c39_i32 : i32
    %236 = arith.index_cast %235 : i32 to index
    %237 = memref.load %arg1[%236] : memref<64xi32, #tpu.memory_space<smem>>
    %238 = arith.index_cast %237 : i32 to index
    %c0_78 = arith.constant 0 : index
    %239 = vector.load %arg2[%238, %c0_78] : memref<512x128xf32, #tpu.memory_space<vmem>>, vector<1x128xf32>
    %c39 = arith.constant 39 : index
    %c0_79 = arith.constant 0 : index
    %240 = vector.load %arg3[%c39, %c0_79] : memref<64x128xf32, #tpu.memory_space<vmem>>, vector<1x128xf32>
    tpu.vector_store %arg3[%c39, %c0_79], %239 {strides = array<i32>} : memref<64x128xf32, #tpu.memory_space<vmem>>, vector<1x128xf32>,
    %c40_i32 = arith.constant 40 : i32
    %241 = arith.addi %0, %c40_i32 : i32
    %242 = arith.index_cast %241 : i32 to index
    %243 = memref.load %arg1[%242] : memref<64xi32, #tpu.memory_space<smem>>
    %244 = arith.index_cast %243 : i32 to index
    %c0_80 = arith.constant 0 : index
    %245 = vector.load %arg2[%244, %c0_80] : memref<512x128xf32, #tpu.memory_space<vmem>>, vector<1x128xf32>
    %c40 = arith.constant 40 : index
    %c0_81 = arith.constant 0 : index
    %246 = vector.load %arg3[%c40, %c0_81] : memref<64x128xf32, #tpu.memory_space<vmem>>, vector<1x128xf32>
    tpu.vector_store %arg3[%c40, %c0_81], %245 {strides = array<i32>} : memref<64x128xf32, #tpu.memory_space<vmem>>, vector<1x128xf32>,
    %c41_i32 = arith.constant 41 : i32
    %247 = arith.addi %0, %c41_i32 : i32
    %248 = arith.index_cast %247 : i32 to index
    %249 = memref.load %arg1[%248] : memref<64xi32, #tpu.memory_space<smem>>
    %250 = arith.index_cast %249 : i32 to index
    %c0_82 = arith.constant 0 : index
    %251 = vector.load %arg2[%250, %c0_82] : memref<512x128xf32, #tpu.memory_space<vmem>>, vector<1x128xf32>
    %c41 = arith.constant 41 : index
    %c0_83 = arith.constant 0 : index
    %252 = vector.load %arg3[%c41, %c0_83] : memref<64x128xf32, #tpu.memory_space<vmem>>, vector<1x128xf32>
    tpu.vector_store %arg3[%c41, %c0_83], %251 {strides = array<i32>} : memref<64x128xf32, #tpu.memory_space<vmem>>, vector<1x128xf32>,
    %c42_i32 = arith.constant 42 : i32
    %253 = arith.addi %0, %c42_i32 : i32
    %254 = arith.index_cast %253 : i32 to index
    %255 = memref.load %arg1[%254] : memref<64xi32, #tpu.memory_space<smem>>
    %256 = arith.index_cast %255 : i32 to index
    %c0_84 = arith.constant 0 : index
    %257 = vector.load %arg2[%256, %c0_84] : memref<512x128xf32, #tpu.memory_space<vmem>>, vector<1x128xf32>
    %c42 = arith.constant 42 : index
    %c0_85 = arith.constant 0 : index
    %258 = vector.load %arg3[%c42, %c0_85] : memref<64x128xf32, #tpu.memory_space<vmem>>, vector<1x128xf32>
    tpu.vector_store %arg3[%c42, %c0_85], %257 {strides = array<i32>} : memref<64x128xf32, #tpu.memory_space<vmem>>, vector<1x128xf32>,
    %c43_i32 = arith.constant 43 : i32
    %259 = arith.addi %0, %c43_i32 : i32
    %260 = arith.index_cast %259 : i32 to index
    %261 = memref.load %arg1[%260] : memref<64xi32, #tpu.memory_space<smem>>
    %262 = arith.index_cast %261 : i32 to index
    %c0_86 = arith.constant 0 : index
    %263 = vector.load %arg2[%262, %c0_86] : memref<512x128xf32, #tpu.memory_space<vmem>>, vector<1x128xf32>
    %c43 = arith.constant 43 : index
    %c0_87 = arith.constant 0 : index
    %264 = vector.load %arg3[%c43, %c0_87] : memref<64x128xf32, #tpu.memory_space<vmem>>, vector<1x128xf32>
    tpu.vector_store %arg3[%c43, %c0_87], %263 {strides = array<i32>} : memref<64x128xf32, #tpu.memory_space<vmem>>, vector<1x128xf32>,
    %c44_i32 = arith.constant 44 : i32
    %265 = arith.addi %0, %c44_i32 : i32
    %266 = arith.index_cast %265 : i32 to index
    %267 = memref.load %arg1[%266] : memref<64xi32, #tpu.memory_space<smem>>
    %268 = arith.index_cast %267 : i32 to index
    %c0_88 = arith.constant 0 : index
    %269 = vector.load %arg2[%268, %c0_88] : memref<512x128xf32, #tpu.memory_space<vmem>>, vector<1x128xf32>
    %c44 = arith.constant 44 : index
    %c0_89 = arith.constant 0 : index
    %270 = vector.load %arg3[%c44, %c0_89] : memref<64x128xf32, #tpu.memory_space<vmem>>, vector<1x128xf32>
    tpu.vector_store %arg3[%c44, %c0_89], %269 {strides = array<i32>} : memref<64x128xf32, #tpu.memory_space<vmem>>, vector<1x128xf32>,
    %c45_i32 = arith.constant 45 : i32
    %271 = arith.addi %0, %c45_i32 : i32
    %272 = arith.index_cast %271 : i32 to index
    %273 = memref.load %arg1[%272] : memref<64xi32, #tpu.memory_space<smem>>
    %274 = arith.index_cast %273 : i32 to index
    %c0_90 = arith.constant 0 : index
    %275 = vector.load %arg2[%274, %c0_90] : memref<512x128xf32, #tpu.memory_space<vmem>>, vector<1x128xf32>
    %c45 = arith.constant 45 : index
    %c0_91 = arith.constant 0 : index
    %276 = vector.load %arg3[%c45, %c0_91] : memref<64x128xf32, #tpu.memory_space<vmem>>, vector<1x128xf32>
    tpu.vector_store %arg3[%c45, %c0_91], %275 {strides = array<i32>} : memref<64x128xf32, #tpu.memory_space<vmem>>, vector<1x128xf32>,
    %c46_i32 = arith.constant 46 : i32
    %277 = arith.addi %0, %c46_i32 : i32
    %278 = arith.index_cast %277 : i32 to index
    %279 = memref.load %arg1[%278] : memref<64xi32, #tpu.memory_space<smem>>
    %280 = arith.index_cast %279 : i32 to index
    %c0_92 = arith.constant 0 : index
    %281 = vector.load %arg2[%280, %c0_92] : memref<512x128xf32, #tpu.memory_space<vmem>>, vector<1x128xf32>
    %c46 = arith.constant 46 : index
    %c0_93 = arith.constant 0 : index
    %282 = vector.load %arg3[%c46, %c0_93] : memref<64x128xf32, #tpu.memory_space<vmem>>, vector<1x128xf32>
    tpu.vector_store %arg3[%c46, %c0_93], %281 {strides = array<i32>} : memref<64x128xf32, #tpu.memory_space<vmem>>, vector<1x128xf32>,
    %c47_i32 = arith.constant 47 : i32
    %283 = arith.addi %0, %c47_i32 : i32
    %284 = arith.index_cast %283 : i32 to index
    %285 = memref.load %arg1[%284] : memref<64xi32, #tpu.memory_space<smem>>
    %286 = arith.index_cast %285 : i32 to index
    %c0_94 = arith.constant 0 : index
    %287 = vector.load %arg2[%286, %c0_94] : memref<512x128xf32, #tpu.memory_space<vmem>>, vector<1x128xf32>
    %c47 = arith.constant 47 : index
    %c0_95 = arith.constant 0 : index
    %288 = vector.load %arg3[%c47, %c0_95] : memref<64x128xf32, #tpu.memory_space<vmem>>, vector<1x128xf32>
    tpu.vector_store %arg3[%c47, %c0_95], %287 {strides = array<i32>} : memref<64x128xf32, #tpu.memory_space<vmem>>, vector<1x128xf32>,
    %c48_i32 = arith.constant 48 : i32
    %289 = arith.addi %0, %c48_i32 : i32
    %290 = arith.index_cast %289 : i32 to index
    %291 = memref.load %arg1[%290] : memref<64xi32, #tpu.memory_space<smem>>
    %292 = arith.index_cast %291 : i32 to index
    %c0_96 = arith.constant 0 : index
    %293 = vector.load %arg2[%292, %c0_96] : memref<512x128xf32, #tpu.memory_space<vmem>>, vector<1x128xf32>
    %c48 = arith.constant 48 : index
    %c0_97 = arith.constant 0 : index
    %294 = vector.load %arg3[%c48, %c0_97] : memref<64x128xf32, #tpu.memory_space<vmem>>, vector<1x128xf32>
    tpu.vector_store %arg3[%c48, %c0_97], %293 {strides = array<i32>} : memref<64x128xf32, #tpu.memory_space<vmem>>, vector<1x128xf32>,
    %c49_i32 = arith.constant 49 : i32
    %295 = arith.addi %0, %c49_i32 : i32
    %296 = arith.index_cast %295 : i32 to index
    %297 = memref.load %arg1[%296] : memref<64xi32, #tpu.memory_space<smem>>
    %298 = arith.index_cast %297 : i32 to index
    %c0_98 = arith.constant 0 : index
    %299 = vector.load %arg2[%298, %c0_98] : memref<512x128xf32, #tpu.memory_space<vmem>>, vector<1x128xf32>
    %c49 = arith.constant 49 : index
    %c0_99 = arith.constant 0 : index
    %300 = vector.load %arg3[%c49, %c0_99] : memref<64x128xf32, #tpu.memory_space<vmem>>, vector<1x128xf32>
    tpu.vector_store %arg3[%c49, %c0_99], %299 {strides = array<i32>} : memref<64x128xf32, #tpu.memory_space<vmem>>, vector<1x128xf32>,
    %c50_i32 = arith.constant 50 : i32
    %301 = arith.addi %0, %c50_i32 : i32
    %302 = arith.index_cast %301 : i32 to index
    %303 = memref.load %arg1[%302] : memref<64xi32, #tpu.memory_space<smem>>
    %304 = arith.index_cast %303 : i32 to index
    %c0_100 = arith.constant 0 : index
    %305 = vector.load %arg2[%304, %c0_100] : memref<512x128xf32, #tpu.memory_space<vmem>>, vector<1x128xf32>
    %c50 = arith.constant 50 : index
    %c0_101 = arith.constant 0 : index
    %306 = vector.load %arg3[%c50, %c0_101] : memref<64x128xf32, #tpu.memory_space<vmem>>, vector<1x128xf32>
    tpu.vector_store %arg3[%c50, %c0_101], %305 {strides = array<i32>} : memref<64x128xf32, #tpu.memory_space<vmem>>, vector<1x128xf32>,
    %c51_i32 = arith.constant 51 : i32
    %307 = arith.addi %0, %c51_i32 : i32
    %308 = arith.index_cast %307 : i32 to index
    %309 = memref.load %arg1[%308] : memref<64xi32, #tpu.memory_space<smem>>
    %310 = arith.index_cast %309 : i32 to index
    %c0_102 = arith.constant 0 : index
    %311 = vector.load %arg2[%310, %c0_102] : memref<512x128xf32, #tpu.memory_space<vmem>>, vector<1x128xf32>
    %c51 = arith.constant 51 : index
    %c0_103 = arith.constant 0 : index
    %312 = vector.load %arg3[%c51, %c0_103] : memref<64x128xf32, #tpu.memory_space<vmem>>, vector<1x128xf32>
    tpu.vector_store %arg3[%c51, %c0_103], %311 {strides = array<i32>} : memref<64x128xf32, #tpu.memory_space<vmem>>, vector<1x128xf32>,
    %c52_i32 = arith.constant 52 : i32
    %313 = arith.addi %0, %c52_i32 : i32
    %314 = arith.index_cast %313 : i32 to index
    %315 = memref.load %arg1[%314] : memref<64xi32, #tpu.memory_space<smem>>
    %316 = arith.index_cast %315 : i32 to index
    %c0_104 = arith.constant 0 : index
    %317 = vector.load %arg2[%316, %c0_104] : memref<512x128xf32, #tpu.memory_space<vmem>>, vector<1x128xf32>
    %c52 = arith.constant 52 : index
    %c0_105 = arith.constant 0 : index
    %318 = vector.load %arg3[%c52, %c0_105] : memref<64x128xf32, #tpu.memory_space<vmem>>, vector<1x128xf32>
    tpu.vector_store %arg3[%c52, %c0_105], %317 {strides = array<i32>} : memref<64x128xf32, #tpu.memory_space<vmem>>, vector<1x128xf32>,
    %c53_i32 = arith.constant 53 : i32
    %319 = arith.addi %0, %c53_i32 : i32
    %320 = arith.index_cast %319 : i32 to index
    %321 = memref.load %arg1[%320] : memref<64xi32, #tpu.memory_space<smem>>
    %322 = arith.index_cast %321 : i32 to index
    %c0_106 = arith.constant 0 : index
    %323 = vector.load %arg2[%322, %c0_106] : memref<512x128xf32, #tpu.memory_space<vmem>>, vector<1x128xf32>
    %c53 = arith.constant 53 : index
    %c0_107 = arith.constant 0 : index
    %324 = vector.load %arg3[%c53, %c0_107] : memref<64x128xf32, #tpu.memory_space<vmem>>, vector<1x128xf32>
    tpu.vector_store %arg3[%c53, %c0_107], %323 {strides = array<i32>} : memref<64x128xf32, #tpu.memory_space<vmem>>, vector<1x128xf32>,
    %c54_i32 = arith.constant 54 : i32
    %325 = arith.addi %0, %c54_i32 : i32
    %326 = arith.index_cast %325 : i32 to index
    %327 = memref.load %arg1[%326] : memref<64xi32, #tpu.memory_space<smem>>
    %328 = arith.index_cast %327 : i32 to index
    %c0_108 = arith.constant 0 : index
    %329 = vector.load %arg2[%328, %c0_108] : memref<512x128xf32, #tpu.memory_space<vmem>>, vector<1x128xf32>
    %c54 = arith.constant 54 : index
    %c0_109 = arith.constant 0 : index
    %330 = vector.load %arg3[%c54, %c0_109] : memref<64x128xf32, #tpu.memory_space<vmem>>, vector<1x128xf32>
    tpu.vector_store %arg3[%c54, %c0_109], %329 {strides = array<i32>} : memref<64x128xf32, #tpu.memory_space<vmem>>, vector<1x128xf32>,
    %c55_i32 = arith.constant 55 : i32
    %331 = arith.addi %0, %c55_i32 : i32
    %332 = arith.index_cast %331 : i32 to index
    %333 = memref.load %arg1[%332] : memref<64xi32, #tpu.memory_space<smem>>
    %334 = arith.index_cast %333 : i32 to index
    %c0_110 = arith.constant 0 : index
    %335 = vector.load %arg2[%334, %c0_110] : memref<512x128xf32, #tpu.memory_space<vmem>>, vector<1x128xf32>
    %c55 = arith.constant 55 : index
    %c0_111 = arith.constant 0 : index
    %336 = vector.load %arg3[%c55, %c0_111] : memref<64x128xf32, #tpu.memory_space<vmem>>, vector<1x128xf32>
    tpu.vector_store %arg3[%c55, %c0_111], %335 {strides = array<i32>} : memref<64x128xf32, #tpu.memory_space<vmem>>, vector<1x128xf32>,
    %c56_i32 = arith.constant 56 : i32
    %337 = arith.addi %0, %c56_i32 : i32
    %338 = arith.index_cast %337 : i32 to index
    %339 = memref.load %arg1[%338] : memref<64xi32, #tpu.memory_space<smem>>
    %340 = arith.index_cast %339 : i32 to index
    %c0_112 = arith.constant 0 : index
    %341 = vector.load %arg2[%340, %c0_112] : memref<512x128xf32, #tpu.memory_space<vmem>>, vector<1x128xf32>
    %c56 = arith.constant 56 : index
    %c0_113 = arith.constant 0 : index
    %342 = vector.load %arg3[%c56, %c0_113] : memref<64x128xf32, #tpu.memory_space<vmem>>, vector<1x128xf32>
    tpu.vector_store %arg3[%c56, %c0_113], %341 {strides = array<i32>} : memref<64x128xf32, #tpu.memory_space<vmem>>, vector<1x128xf32>,
    %c57_i32 = arith.constant 57 : i32
    %343 = arith.addi %0, %c57_i32 : i32
    %344 = arith.index_cast %343 : i32 to index
    %345 = memref.load %arg1[%344] : memref<64xi32, #tpu.memory_space<smem>>
    %346 = arith.index_cast %345 : i32 to index
    %c0_114 = arith.constant 0 : index
    %347 = vector.load %arg2[%346, %c0_114] : memref<512x128xf32, #tpu.memory_space<vmem>>, vector<1x128xf32>
    %c57 = arith.constant 57 : index
    %c0_115 = arith.constant 0 : index
    %348 = vector.load %arg3[%c57, %c0_115] : memref<64x128xf32, #tpu.memory_space<vmem>>, vector<1x128xf32>
    tpu.vector_store %arg3[%c57, %c0_115], %347 {strides = array<i32>} : memref<64x128xf32, #tpu.memory_space<vmem>>, vector<1x128xf32>,
    %c58_i32 = arith.constant 58 : i32
    %349 = arith.addi %0, %c58_i32 : i32
    %350 = arith.index_cast %349 : i32 to index
    %351 = memref.load %arg1[%350] : memref<64xi32, #tpu.memory_space<smem>>
    %352 = arith.index_cast %351 : i32 to index
    %c0_116 = arith.constant 0 : index
    %353 = vector.load %arg2[%352, %c0_116] : memref<512x128xf32, #tpu.memory_space<vmem>>, vector<1x128xf32>
    %c58 = arith.constant 58 : index
    %c0_117 = arith.constant 0 : index
    %354 = vector.load %arg3[%c58, %c0_117] : memref<64x128xf32, #tpu.memory_space<vmem>>, vector<1x128xf32>
    tpu.vector_store %arg3[%c58, %c0_117], %353 {strides = array<i32>} : memref<64x128xf32, #tpu.memory_space<vmem>>, vector<1x128xf32>,
    %c59_i32 = arith.constant 59 : i32
    %355 = arith.addi %0, %c59_i32 : i32
    %356 = arith.index_cast %355 : i32 to index
    %357 = memref.load %arg1[%356] : memref<64xi32, #tpu.memory_space<smem>>
    %358 = arith.index_cast %357 : i32 to index
    %c0_118 = arith.constant 0 : index
    %359 = vector.load %arg2[%358, %c0_118] : memref<512x128xf32, #tpu.memory_space<vmem>>, vector<1x128xf32>
    %c59 = arith.constant 59 : index
    %c0_119 = arith.constant 0 : index
    %360 = vector.load %arg3[%c59, %c0_119] : memref<64x128xf32, #tpu.memory_space<vmem>>, vector<1x128xf32>
    tpu.vector_store %arg3[%c59, %c0_119], %359 {strides = array<i32>} : memref<64x128xf32, #tpu.memory_space<vmem>>, vector<1x128xf32>,
    %c60_i32 = arith.constant 60 : i32
    %361 = arith.addi %0, %c60_i32 : i32
    %362 = arith.index_cast %361 : i32 to index
    %363 = memref.load %arg1[%362] : memref<64xi32, #tpu.memory_space<smem>>
    %364 = arith.index_cast %363 : i32 to index
    %c0_120 = arith.constant 0 : index
    %365 = vector.load %arg2[%364, %c0_120] : memref<512x128xf32, #tpu.memory_space<vmem>>, vector<1x128xf32>
    %c60 = arith.constant 60 : index
    %c0_121 = arith.constant 0 : index
    %366 = vector.load %arg3[%c60, %c0_121] : memref<64x128xf32, #tpu.memory_space<vmem>>, vector<1x128xf32>
    tpu.vector_store %arg3[%c60, %c0_121], %365 {strides = array<i32>} : memref<64x128xf32, #tpu.memory_space<vmem>>, vector<1x128xf32>,
    %c61_i32 = arith.constant 61 : i32
    %367 = arith.addi %0, %c61_i32 : i32
    %368 = arith.index_cast %367 : i32 to index
    %369 = memref.load %arg1[%368] : memref<64xi32, #tpu.memory_space<smem>>
    %370 = arith.index_cast %369 : i32 to index
    %c0_122 = arith.constant 0 : index
    %371 = vector.load %arg2[%370, %c0_122] : memref<512x128xf32, #tpu.memory_space<vmem>>, vector<1x128xf32>
    %c61 = arith.constant 61 : index
    %c0_123 = arith.constant 0 : index
    %372 = vector.load %arg3[%c61, %c0_123] : memref<64x128xf32, #tpu.memory_space<vmem>>, vector<1x128xf32>
    tpu.vector_store %arg3[%c61, %c0_123], %371 {strides = array<i32>} : memref<64x128xf32, #tpu.memory_space<vmem>>, vector<1x128xf32>,
    %c62_i32 = arith.constant 62 : i32
    %373 = arith.addi %0, %c62_i32 : i32
    %374 = arith.index_cast %373 : i32 to index
    %375 = memref.load %arg1[%374] : memref<64xi32, #tpu.memory_space<smem>>
    %376 = arith.index_cast %375 : i32 to index
    %c0_124 = arith.constant 0 : index
    %377 = vector.load %arg2[%376, %c0_124] : memref<512x128xf32, #tpu.memory_space<vmem>>, vector<1x128xf32>
    %c62 = arith.constant 62 : index
    %c0_125 = arith.constant 0 : index
    %378 = vector.load %arg3[%c62, %c0_125] : memref<64x128xf32, #tpu.memory_space<vmem>>, vector<1x128xf32>
    tpu.vector_store %arg3[%c62, %c0_125], %377 {strides = array<i32>} : memref<64x128xf32, #tpu.memory_space<vmem>>, vector<1x128xf32>,
    %c63_i32 = arith.constant 63 : i32
    %379 = arith.addi %0, %c63_i32 : i32
    %380 = arith.index_cast %379 : i32 to index
    %381 = memref.load %arg1[%380] : memref<64xi32, #tpu.memory_space<smem>>
    %382 = arith.index_cast %381 : i32 to index
    %c0_126 = arith.constant 0 : index
    %383 = vector.load %arg2[%382, %c0_126] : memref<512x128xf32, #tpu.memory_space<vmem>>, vector<1x128xf32>
    %c63 = arith.constant 63 : index
    %c0_127 = arith.constant 0 : index
    %384 = vector.load %arg3[%c63, %c0_127] : memref<64x128xf32, #tpu.memory_space<vmem>>, vector<1x128xf32>
    tpu.vector_store %arg3[%c63, %c0_127], %383 {strides = array<i32>} : memref<64x128xf32, #tpu.memory_space<vmem>>, vector<1x128xf32>,
    return
  }
  func.func @transform_0(%arg0: i32, %arg1: memref<64xi32, #tpu.memory_space<smem>>) -> (i32, i32) {
    %c0_i32 = arith.constant 0 : i32
    %c0_i32_0 = arith.constant 0 : i32
    %c0_i32_1 = arith.constant 0 : i32
    return %c0_i32, %c0_i32_0 : i32, i32
  }
  func.func @transform_1(%arg0: i32, %arg1: memref<64xi32, #tpu.memory_space<smem>>) -> (i32, i32) {
    %c0_i32 = arith.constant 0 : i32
    %c0_i32_0 = arith.constant 0 : i32
    return %arg0, %c0_i32 : i32, i32
  }
}

</mosaic_0001>

<llo_original>
// kernel: tpu_custom_call.1
$region0: #{tpu_custom_call.1}
  #allocation0 [shape = 'u32[]', space=smem, size = 0x4, offset = 0x4, fixed_abs, tag = 'smem constant byte address 0x4 - core index']
  #allocation1 [shape = 'u32[144,128]{1,0:T(1,128)}', space=vmem, size = 0x12000, scoped, tag = 'internal scratch']
  #allocation2 [shape = 's32[1]{0}', space=sflag, size = 0x4, scoped, tag = 'scoped memory for tpu_custom_call.1']
  #allocation3 [shape = 'u8[512]{0}', space=smem, size = 0x200, scoped, tag = 'prefetched SMEM operand 0']
  %s0 = inlined_call_operand.hbm [shape: s32[64], index: 0, kind: input, shape index: {}]
  %s1 = inlined_call_operand.hbm [shape: f32[512,128], index: 1, kind: input, shape index: {}]
  %s2 = inlined_call_operand.hbm [shape: f32[64,128], index: 2, kind: output, shape index: {}]
  %s3 = sld [smem:[#allocation0]]
  $region18: #{tpu_custom_call.1} parent=0
    _
  %s5 = ssub.s32 1, %s3
  %s6 = scalar_select 0, %s5, %s3
  %8 = dma.hbm_to_smem %s0, 16, [#allocation3], [#allocation2]
  %9 = dma.done [#allocation2], 16
  %10 = sfence
  $region1: #{tpu_custom_call.1} parent=0
    #allocation4 [shape = 'u8[262144]{0}', space=vmem, size = 0x40000, scoped, tag = 'input window, operand 1, single buffered']
    #allocation5 [shape = 's32[1]{0}', space=sflag, size = 0x4, scoped, tag = 'scoped memory for tpu_custom_call.1']
    #allocation6 [shape = 's32[1]{0}', space=sflag, size = 0x4, scoped, tag = 'scoped memory for tpu_custom_call.1']
    #allocation7 [shape = 'u8[32768]{0}', space=vmem, size = 0x8000, scoped, tag = 'output window, operand 0, single buffered']
    %11 = vsyncpa [#allocation5], 0
    %12 = vsyncpa [#allocation6], 0
    // Predicated region
    $region2: #{tpu_custom_call.1} parent=1 // pred_check
      _
    $region3: #{tpu_custom_call.1} parent=1 // pred_check_branch
      %14 = sbr.rel (0) target = $region5
    $region4: #{tpu_custom_call.1} parent=1 // pred_region
      %s16 = ssub.s32 8192, 8192
      %17 = vsyncadd [#allocation5], %s16
      %s18 = sshll.u32 [#allocation4], 4
      %s19 = int_to_ptr.vmem [resolvable:$true] %s18
      %24 = dma.hbm_to_vmem [thread:$0]  %s1, 8192, %s19, [#allocation5], 128, 128, 8
    $region5: #{tpu_custom_call.1} parent=1 // pred_fallthru
      _
    // Predicated region
    $region6: #{tpu_custom_call.1} parent=1 // pred_check
      _
    $region7: #{tpu_custom_call.1} parent=1 // pred_check_branch
      %26 = sbr.rel (0) target = $region9
    $region8: #{tpu_custom_call.1} parent=1 // pred_region
      %27 = dma.done [#allocation5], 8192
    $region9: #{tpu_custom_call.1} parent=1 // pred_fallthru
      _
    %s28 = smul.u32 0, 64
    %s29 = sld [smem:[#allocation3 + %s28]]
    %s30 = scalar_lea.vmem [#allocation4], %s29
    %v31 = vld [vmem:[%s30] sm:$0x1]
    %32 = vst [vmem:[#allocation7] sm:$0x1] %v31
    %s33 = sadd.s32 %s28, 1
    %s34 = sld [smem:[#allocation3 + %s33]]
    %s35 = scalar_lea.vmem [#allocation4], %s34
    %v36 = vld [vmem:[%s35] sm:$0x1]
    %37 = vst [vmem:[#allocation7 + $0x1] sm:$0x1] %v36
    %s38 = sadd.s32 %s28, 2
    %s39 = sld [smem:[#allocation3 + %s38]]
    %s40 = scalar_lea.vmem [#allocation4], %s39
    %v41 = vld [vmem:[%s40] sm:$0x1]
    %42 = vst [vmem:[#allocation7 + $0x2] sm:$0x1] %v41
    %s43 = sadd.s32 %s28, 3
    %s44 = sld [smem:[#allocation3 + %s43]]
    %s45 = scalar_lea.vmem [#allocation4], %s44
    %v46 = vld [vmem:[%s45] sm:$0x1]
    %47 = vst [vmem:[#allocation7 + $0x3] sm:$0x1] %v46
    %s48 = sadd.s32 %s28, 4
    %s49 = sld [smem:[#allocation3 + %s48]]
    %s50 = scalar_lea.vmem [#allocation4], %s49
    %v51 = vld [vmem:[%s50] sm:$0x1]
    %52 = vst [vmem:[#allocation7 + $0x4] sm:$0x1] %v51
    %s53 = sadd.s32 %s28, 5
    %s54 = sld [smem:[#allocation3 + %s53]]
    %s55 = scalar_lea.vmem [#allocation4], %s54
    %v56 = vld [vmem:[%s55] sm:$0x1]
    %57 = vst [vmem:[#allocation7 + $0x5] sm:$0x1] %v56
    %s58 = sadd.s32 %s28, 6
    %s59 = sld [smem:[#allocation3 + %s58]]
    %s60 = scalar_lea.vmem [#allocation4], %s59
    %v61 = vld [vmem:[%s60] sm:$0x1]
    %62 = vst [vmem:[#allocation7 + $0x6] sm:$0x1] %v61
    %s63 = sadd.s32 %s28, 7
    %s64 = sld [smem:[#allocation3 + %s63]]
    %s65 = scalar_lea.vmem [#allocation4], %s64
    %v66 = vld [vmem:[%s65] sm:$0x1]
    %67 = vst [vmem:[#allocation7 + $0x7] sm:$0x1] %v66
    %s68 = sadd.s32 %s28, 8
    %s69 = sld [smem:[#allocation3 + %s68]]
    %s70 = scalar_lea.vmem [#allocation4], %s69
    %v71 = vld [vmem:[%s70] sm:$0x1]
    %72 = vst [vmem:[#allocation7 + $0x8] sm:$0x1] %v71
    %s73 = sadd.s32 %s28, 9
    %s74 = sld [smem:[#allocation3 + %s73]]
    %s75 = scalar_lea.vmem [#allocation4], %s74
    %v76 = vld [vmem:[%s75] sm:$0x1]
    %77 = vst [vmem:[#allocation7 + $0x9] sm:$0x1] %v76
    %s78 = sadd.s32 %s28, 10
    %s79 = sld [smem:[#allocation3 + %s78]]
    %s80 = scalar_lea.vmem [#allocation4], %s79
    %v81 = vld [vmem:[%s80] sm:$0x1]
    %82 = vst [vmem:[#allocation7 + $0xa] sm:$0x1] %v81
    %s83 = sadd.s32 %s28, 11
    %s84 = sld [smem:[#allocation3 + %s83]]
    %s85 = scalar_lea.vmem [#allocation4], %s84
    %v86 = vld [vmem:[%s85] sm:$0x1]
    %87 = vst [vmem:[#allocation7 + $0xb] sm:$0x1] %v86
    %s88 = sadd.s32 %s28, 12
    %s89 = sld [smem:[#allocation3 + %s88]]
    %s90 = scalar_lea.vmem [#allocation4], %s89
    %v91 = vld [vmem:[%s90] sm:$0x1]
    %92 = vst [vmem:[#allocation7 + $0xc] sm:$0x1] %v91
    %s93 = sadd.s32 %s28, 13
    %s94 = sld [smem:[#allocation3 + %s93]]
    %s95 = scalar_lea.vmem [#allocation4], %s94
    %v96 = vld [vmem:[%s95] sm:$0x1]
    %97 = vst [vmem:[#allocation7 + $0xd] sm:$0x1] %v96
    %s98 = sadd.s32 %s28, 14
    %s99 = sld [smem:[#allocation3 + %s98]]
    %s100 = scalar_lea.vmem [#allocation4], %s99
    %v101 = vld [vmem:[%s100] sm:$0x1]
    %102 = vst [vmem:[#allocation7 + $0xe] sm:$0x1] %v101
    %s103 = sadd.s32 %s28, 15
    %s104 = sld [smem:[#allocation3 + %s103]]
    %s105 = scalar_lea.vmem [#allocation4], %s104
    %v106 = vld [vmem:[%s105] sm:$0x1]
    %107 = vst [vmem:[#allocation7 + $0xf] sm:$0x1] %v106
    %s108 = sadd.s32 %s28, 16
    %s109 = sld [smem:[#allocation3 + %s108]]
    %s110 = scalar_lea.vmem [#allocation4], %s109
    %v111 = vld [vmem:[%s110] sm:$0x1]
    %112 = vst [vmem:[#allocation7 + $0x10] sm:$0x1] %v111
    %s113 = sadd.s32 %s28, 17
    %s114 = sld [smem:[#allocation3 + %s113]]
    %s115 = scalar_lea.vmem [#allocation4], %s114
    %v116 = vld [vmem:[%s115] sm:$0x1]
    %117 = vst [vmem:[#allocation7 + $0x11] sm:$0x1] %v116
    %s118 = sadd.s32 %s28, 18
    %s119 = sld [smem:[#allocation3 + %s118]]
    %s120 = scalar_lea.vmem [#allocation4], %s119
    %v121 = vld [vmem:[%s120] sm:$0x1]
    %122 = vst [vmem:[#allocation7 + $0x12] sm:$0x1] %v121
    %s123 = sadd.s32 %s28, 19
    %s124 = sld [smem:[#allocation3 + %s123]]
    %s125 = scalar_lea.vmem [#allocation4], %s124
    %v126 = vld [vmem:[%s125] sm:$0x1]
    %127 = vst [vmem:[#allocation7 + $0x13] sm:$0x1] %v126
    %s128 = sadd.s32 %s28, 20
    %s129 = sld [smem:[#allocation3 + %s128]]
    %s130 = scalar_lea.vmem [#allocation4], %s129
    %v131 = vld [vmem:[%s130] sm:$0x1]
    %132 = vst [vmem:[#allocation7 + $0x14] sm:$0x1] %v131
    %s133 = sadd.s32 %s28, 21
    %s134 = sld [smem:[#allocation3 + %s133]]
    %s135 = scalar_lea.vmem [#allocation4], %s134
    %v136 = vld [vmem:[%s135] sm:$0x1]
    %137 = vst [vmem:[#allocation7 + $0x15] sm:$0x1] %v136
    %s138 = sadd.s32 %s28, 22
    %s139 = sld [smem:[#allocation3 + %s138]]
    %s140 = scalar_lea.vmem [#allocation4], %s139
    %v141 = vld [vmem:[%s140] sm:$0x1]
    %142 = vst [vmem:[#allocation7 + $0x16] sm:$0x1] %v141
    %s143 = sadd.s32 %s28, 23
    %s144 = sld [smem:[#allocation3 + %s143]]
    %s145 = scalar_lea.vmem [#allocation4], %s144
    %v146 = vld [vmem:[%s145] sm:$0x1]
    %147 = vst [vmem:[#allocation7 + $0x17] sm:$0x1] %v146
    %s148 = sadd.s32 %s28, 24
    %s149 = sld [smem:[#allocation3 + %s148]]
    %s150 = scalar_lea.vmem [#allocation4], %s149
    %v151 = vld [vmem:[%s150] sm:$0x1]
    %152 = vst [vmem:[#allocation7 + $0x18] sm:$0x1] %v151
    %s153 = sadd.s32 %s28, 25
    %s154 = sld [smem:[#allocation3 + %s153]]
    %s155 = scalar_lea.vmem [#allocation4], %s154
    %v156 = vld [vmem:[%s155] sm:$0x1]
    %157 = vst [vmem:[#allocation7 + $0x19] sm:$0x1] %v156
    %s158 = sadd.s32 %s28, 26
    %s159 = sld [smem:[#allocation3 + %s158]]
    %s160 = scalar_lea.vmem [#allocation4], %s159
    %v161 = vld [vmem:[%s160] sm:$0x1]
    %162 = vst [vmem:[#allocation7 + $0x1a] sm:$0x1] %v161
    %s163 = sadd.s32 %s28, 27
    %s164 = sld [smem:[#allocation3 + %s163]]
    %s165 = scalar_lea.vmem [#allocation4], %s164
    %v166 = vld [vmem:[%s165] sm:$0x1]
    %167 = vst [vmem:[#allocation7 + $0x1b] sm:$0x1] %v166
    %s168 = sadd.s32 %s28, 28
    %s169 = sld [smem:[#allocation3 + %s168]]
    %s170 = scalar_lea.vmem [#allocation4], %s169
    %v171 = vld [vmem:[%s170] sm:$0x1]
    %172 = vst [vmem:[#allocation7 + $0x1c] sm:$0x1] %v171
    %s173 = sadd.s32 %s28, 29
    %s174 = sld [smem:[#allocation3 + %s173]]
    %s175 = scalar_lea.vmem [#allocation4], %s174
    %v176 = vld [vmem:[%s175] sm:$0x1]
    %177 = vst [vmem:[#allocation7 + $0x1d] sm:$0x1] %v176
    %s178 = sadd.s32 %s28, 30
    %s179 = sld [smem:[#allocation3 + %s178]]
    %s180 = scalar_lea.vmem [#allocation4], %s179
    %v181 = vld [vmem:[%s180] sm:$0x1]
    %182 = vst [vmem:[#allocation7 + $0x1e] sm:$0x1] %v181
    %s183 = sadd.s32 %s28, 31
    %s184 = sld [smem:[#allocation3 + %s183]]
    %s185 = scalar_lea.vmem [#allocation4], %s184
    %v186 = vld [vmem:[%s185] sm:$0x1]
    %187 = vst [vmem:[#allocation7 + $0x1f] sm:$0x1] %v186
    %s188 = sadd.s32 %s28, 32
    %s189 = sld [smem:[#allocation3 + %s188]]
    %s190 = scalar_lea.vmem [#allocation4], %s189
    %v191 = vld [vmem:[%s190] sm:$0x1]
    %192 = vst [vmem:[#allocation7 + $0x20] sm:$0x1] %v191
    %s193 = sadd.s32 %s28, 33
    %s194 = sld [smem:[#allocation3 + %s193]]
    %s195 = scalar_lea.vmem [#allocation4], %s194
    %v196 = vld [vmem:[%s195] sm:$0x1]
    %197 = vst [vmem:[#allocation7 + $0x21] sm:$0x1] %v196
    %s198 = sadd.s32 %s28, 34
    %s199 = sld [smem:[#allocation3 + %s198]]
    %s200 = scalar_lea.vmem [#allocation4], %s199
    %v201 = vld [vmem:[%s200] sm:$0x1]
    %202 = vst [vmem:[#allocation7 + $0x22] sm:$0x1] %v201
    %s203 = sadd.s32 %s28, 35
    %s204 = sld [smem:[#allocation3 + %s203]]
    %s205 = scalar_lea.vmem [#allocation4], %s204
    %v206 = vld [vmem:[%s205] sm:$0x1]
    %207 = vst [vmem:[#allocation7 + $0x23] sm:$0x1] %v206
    %s208 = sadd.s32 %s28, 36
    %s209 = sld [smem:[#allocation3 + %s208]]
    %s210 = scalar_lea.vmem [#allocation4], %s209
    %v211 = vld [vmem:[%s210] sm:$0x1]
    %212 = vst [vmem:[#allocation7 + $0x24] sm:$0x1] %v211
    %s213 = sadd.s32 %s28, 37
    %s214 = sld [smem:[#allocation3 + %s213]]
    %s215 = scalar_lea.vmem [#allocation4], %s214
    %v216 = vld [vmem:[%s215] sm:$0x1]
    %217 = vst [vmem:[#allocation7 + $0x25] sm:$0x1] %v216
    %s218 = sadd.s32 %s28, 38
    %s219 = sld [smem:[#allocation3 + %s218]]
    %s220 = scalar_lea.vmem [#allocation4], %s219
    %v221 = vld [vmem:[%s220] sm:$0x1]
    %222 = vst [vmem:[#allocation7 + $0x26] sm:$0x1] %v221
    %s223 = sadd.s32 %s28, 39
    %s224 = sld [smem:[#allocation3 + %s223]]
    %s225 = scalar_lea.vmem [#allocation4], %s224
    %v226 = vld [vmem:[%s225] sm:$0x1]
    %227 = vst [vmem:[#allocation7 + $0x27] sm:$0x1] %v226
    %s228 = sadd.s32 %s28, 40
    %s229 = sld [smem:[#allocation3 + %s228]]
    %s230 = scalar_lea.vmem [#allocation4], %s229
    %v231 = vld [vmem:[%s230] sm:$0x1]
    %232 = vst [vmem:[#allocation7 + $0x28] sm:$0x1] %v231
    %s233 = sadd.s32 %s28, 41
    %s234 = sld [smem:[#allocation3 + %s233]]
    %s235 = scalar_lea.vmem [#allocation4], %s234
    %v236 = vld [vmem:[%s235] sm:$0x1]
    %237 = vst [vmem:[#allocation7 + $0x29] sm:$0x1] %v236
    %s238 = sadd.s32 %s28, 42
    %s239 = sld [smem:[#allocation3 + %s238]]
    %s240 = scalar_lea.vmem [#allocation4], %s239
    %v241 = vld [vmem:[%s240] sm:$0x1]
    %242 = vst [vmem:[#allocation7 + $0x2a] sm:$0x1] %v241
    %s243 = sadd.s32 %s28, 43
    %s244 = sld [smem:[#allocation3 + %s243]]
    %s245 = scalar_lea.vmem [#allocation4], %s244
    %v246 = vld [vmem:[%s245] sm:$0x1]
    %247 = vst [vmem:[#allocation7 + $0x2b] sm:$0x1] %v246
    %s248 = sadd.s32 %s28, 44
    %s249 = sld [smem:[#allocation3 + %s248]]
    %s250 = scalar_lea.vmem [#allocation4], %s249
    %v251 = vld [vmem:[%s250] sm:$0x1]
    %252 = vst [vmem:[#allocation7 + $0x2c] sm:$0x1] %v251
    %s253 = sadd.s32 %s28, 45
    %s254 = sld [smem:[#allocation3 + %s253]]
    %s255 = scalar_lea.vmem [#allocation4], %s254
    %v256 = vld [vmem:[%s255] sm:$0x1]
    %257 = vst [vmem:[#allocation7 + $0x2d] sm:$0x1] %v256
    %s258 = sadd.s32 %s28, 46
    %s259 = sld [smem:[#allocation3 + %s258]]
    %s260 = scalar_lea.vmem [#allocation4], %s259
    %v261 = vld [vmem:[%s260] sm:$0x1]
    %262 = vst [vmem:[#allocation7 + $0x2e] sm:$0x1] %v261
    %s263 = sadd.s32 %s28, 47
    %s264 = sld [smem:[#allocation3 + %s263]]
    %s265 = scalar_lea.vmem [#allocation4], %s264
    %v266 = vld [vmem:[%s265] sm:$0x1]
    %267 = vst [vmem:[#allocation7 + $0x2f] sm:$0x1] %v266
    %s268 = sadd.s32 %s28, 48
    %s269 = sld [smem:[#allocation3 + %s268]]
    %s270 = scalar_lea.vmem [#allocation4], %s269
    %v271 = vld [vmem:[%s270] sm:$0x1]
    %272 = vst [vmem:[#allocation7 + $0x30] sm:$0x1] %v271
    %s273 = sadd.s32 %s28, 49
    %s274 = sld [smem:[#allocation3 + %s273]]
    %s275 = scalar_lea.vmem [#allocation4], %s274
    %v276 = vld [vmem:[%s275] sm:$0x1]
    %277 = vst [vmem:[#allocation7 + $0x31] sm:$0x1] %v276
    %s278 = sadd.s32 %s28, 50
    %s279 = sld [smem:[#allocation3 + %s278]]
    %s280 = scalar_lea.vmem [#allocation4], %s279
    %v281 = vld [vmem:[%s280] sm:$0x1]
    %282 = vst [vmem:[#allocation7 + $0x32] sm:$0x1] %v281
    %s283 = sadd.s32 %s28, 51
    %s284 = sld [smem:[#allocation3 + %s283]]
    %s285 = scalar_lea.vmem [#allocation4], %s284
    %v286 = vld [vmem:[%s285] sm:$0x1]
    %287 = vst [vmem:[#allocation7 + $0x33] sm:$0x1] %v286
    %s288 = sadd.s32 %s28, 52
    %s289 = sld [smem:[#allocation3 + %s288]]
    %s290 = scalar_lea.vmem [#allocation4], %s289
    %v291 = vld [vmem:[%s290] sm:$0x1]
    %292 = vst [vmem:[#allocation7 + $0x34] sm:$0x1] %v291
    %s293 = sadd.s32 %s28, 53
    %s294 = sld [smem:[#allocation3 + %s293]]
    %s295 = scalar_lea.vmem [#allocation4], %s294
    %v296 = vld [vmem:[%s295] sm:$0x1]
    %297 = vst [vmem:[#allocation7 + $0x35] sm:$0x1] %v296
    %s298 = sadd.s32 %s28, 54
    %s299 = sld [smem:[#allocation3 + %s298]]
    %s300 = scalar_lea.vmem [#allocation4], %s299
    %v301 = vld [vmem:[%s300] sm:$0x1]
    %302 = vst [vmem:[#allocation7 + $0x36] sm:$0x1] %v301
    %s303 = sadd.s32 %s28, 55
    %s304 = sld [smem:[#allocation3 + %s303]]
    %s305 = scalar_lea.vmem [#allocation4], %s304
    %v306 = vld [vmem:[%s305] sm:$0x1]
    %307 = vst [vmem:[#allocation7 + $0x37] sm:$0x1] %v306
    %s308 = sadd.s32 %s28, 56
    %s309 = sld [smem:[#allocation3 + %s308]]
    %s310 = scalar_lea.vmem [#allocation4], %s309
    %v311 = vld [vmem:[%s310] sm:$0x1]
    %312 = vst [vmem:[#allocation7 + $0x38] sm:$0x1] %v311
    %s313 = sadd.s32 %s28, 57
    %s314 = sld [smem:[#allocation3 + %s313]]
    %s315 = scalar_lea.vmem [#allocation4], %s314
    %v316 = vld [vmem:[%s315] sm:$0x1]
    %317 = vst [vmem:[#allocation7 + $0x39] sm:$0x1] %v316
    %s318 = sadd.s32 %s28, 58
    %s319 = sld [smem:[#allocation3 + %s318]]
    %s320 = scalar_lea.vmem [#allocation4], %s319
    %v321 = vld [vmem:[%s320] sm:$0x1]
    %322 = vst [vmem:[#allocation7 + $0x3a] sm:$0x1] %v321
    %s323 = sadd.s32 %s28, 59
    %s324 = sld [smem:[#allocation3 + %s323]]
    %s325 = scalar_lea.vmem [#allocation4], %s324
    %v326 = vld [vmem:[%s325] sm:$0x1]
    %327 = vst [vmem:[#allocation7 + $0x3b] sm:$0x1] %v326
    %s328 = sadd.s32 %s28, 60
    %s329 = sld [smem:[#allocation3 + %s328]]
    %s330 = scalar_lea.vmem [#allocation4], %s329
    %v331 = vld [vmem:[%s330] sm:$0x1]
    %332 = vst [vmem:[#allocation7 + $0x3c] sm:$0x1] %v331
    %s333 = sadd.s32 %s28, 61
    %s334 = sld [smem:[#allocation3 + %s333]]
    %s335 = scalar_lea.vmem [#allocation4], %s334
    %v336 = vld [vmem:[%s335] sm:$0x1]
    %337 = vst [vmem:[#allocation7 + $0x3d] sm:$0x1] %v336
    %s338 = sadd.s32 %s28, 62
    %s339 = sld [smem:[#allocation3 + %s338]]
    %s340 = scalar_lea.vmem [#allocation4], %s339
    %v341 = vld [vmem:[%s340] sm:$0x1]
    %342 = vst [vmem:[#allocation7 + $0x3e] sm:$0x1] %v341
    %s343 = sadd.s32 %s28, 63
    %s344 = sld [smem:[#allocation3 + %s343]]
    %s345 = scalar_lea.vmem [#allocation4], %s344
    %v346 = vld [vmem:[%s345] sm:$0x1]
    %347 = vst [vmem:[#allocation7 + $0x3f] sm:$0x1] %v346
    // Predicated region
    $region10: #{tpu_custom_call.1} parent=1 // pred_check
      _
    $region11: #{tpu_custom_call.1} parent=1 // pred_check_branch
      %349 = sbr.rel (0) target = $region13
    $region12: #{tpu_custom_call.1} parent=1 // pred_region
      %s351 = ssub.s32 1024, 1024
      %352 = vsyncadd [#allocation6], %s351
      %s353 = sshll.u32 [#allocation7], 4
      %s354 = int_to_ptr.vmem [resolvable:$true] %s353
      %359 = dma.vmem_to_hbm [thread:$0]  %s354, 1024, %s2, [#allocation6], 128, 128, 8
    $region13: #{tpu_custom_call.1} parent=1 // pred_fallthru
      _
    // Predicated region
    $region14: #{tpu_custom_call.1} parent=1 // pred_check
      _
    $region15: #{tpu_custom_call.1} parent=1 // pred_check_branch
      %361 = sbr.rel (0) target = $region17
    $region16: #{tpu_custom_call.1} parent=1 // pred_region
      %362 = dma.done [#allocation6], 1024
    $region17: #{tpu_custom_call.1} parent=1 // pred_fallthru
      _
    %363 = vsyncpa [#allocation5], 1
    %364 = vsyncpa [#allocation6], 1

</llo_original>
